<compile_context>
chip_gen: v7x
topology: tpu7x:2x2x1
jax: 0.10.0
libtpu: 0.0.40
codegen_flags: <defaults>
</compile_context>

<pallas_src>
import functools

import jax
import jax.numpy as jnp
from jax.experimental import pallas as pl
from jax.experimental.pallas import tpu as pltpu

EPS = 1e-5
ALPHA = 0.9  # "momentum" in the DIY PyTorch module (applied to the NEW stat)


# ---------------------------------------------------------------------------
# Generation-dependent tiling configuration
# ---------------------------------------------------------------------------
def _tpu_generation():
    try:
        kind = jax.devices()[0].device_kind.lower()
    except Exception:
        return "unknown"
    if "v5 lite" in kind or "v5e" in kind or "v5lite" in kind:
        return "v5e"
    if "v6" in kind:
        return "v6e"
    if "7" in kind:
        return "v7x"
    return "unknown"


# gen -> (streaming tile target bytes, fused per-block f32 byte limit,
#         vmem_limit_bytes override or None)
_GEN_CFG = {
    "v5e":     (2 << 20, 2 << 20, None),      # 16 MiB scoped-VMEM default
    "v6e":     (4 << 20, 4 << 20, None),      # 32 MiB scoped-VMEM default
    "v7x":     (6 << 20, 4 << 20, 48 << 20),  # 3.2 TB/s HBM, 64 MiB physical VMEM
    "unknown": (2 << 20, 2 << 20, None),      # conservative
}


def _cparams(sem, vmem_limit):
    kwargs = dict(dimension_semantics=sem)
    if vmem_limit is not None:
        kwargs["vmem_limit_bytes"] = int(vmem_limit)
    return pltpu.CompilerParams(**kwargs)


# ---------------------------------------------------------------------------
# Kernels
# ---------------------------------------------------------------------------
def _bn_fused_kernel(x_ref, gamma_ref, beta_ref, rm_ref, rv_ref,
                     y_ref, new_rm_ref, new_rv_ref, *, inv_count, eps, alpha):
    """Single-pass BN for one channel block: x read once from HBM, cached in
    VMEM, stats + normalization + running-stat blend all computed in-block.

    x_ref / y_ref: (N, CB, S); params / stats: (CB, 1).
    """
    x = x_ref[...].astype(jnp.float32)                     # (N, CB, S)
    # Batch-axis reduction first (pure VPU adds), one cross-lane XLU reduce at
    # the end -> shorter dependent f32 chains, fewer XLU ops.
    xs = jnp.sum(x, axis=0)                                # (CB, S)
    xsq = jnp.sum(x * x, axis=0)                           # (CB, S)
    mean = jnp.sum(xs, axis=1, keepdims=True) * inv_count  # (CB, 1)
    var = jnp.maximum(jnp.sum(xsq, axis=1, keepdims=True) * inv_count
                      - mean * mean, 0.0)                  # biased, clamped
    inv_std = jax.lax.rsqrt(var + eps)
    gamma = gamma_ref[...].astype(jnp.float32)
    beta = beta_ref[...].astype(jnp.float32)
    scale = gamma * inv_std
    bias = beta - mean * scale
    y_ref[...] = (x * scale[None, :, :] + bias[None, :, :]).astype(y_ref.dtype)
    new_rm_ref[...] = (alpha * mean
                       + (1.0 - alpha) * rm_ref[...].astype(jnp.float32)
                       ).astype(new_rm_ref.dtype)
    new_rv_ref[...] = (alpha * var
                       + (1.0 - alpha) * rv_ref[...].astype(jnp.float32)
                       ).astype(new_rv_ref.dtype)


def _bn_stats_kernel(x_ref, gamma_ref, beta_ref, rm_ref, rv_ref,
                     scale_ref, bias_ref, new_rm_ref, new_rv_ref,
                     sum_sc, sumsq_sc, *, inv_count, eps, alpha):
    """Two-pass path, pass 1: per-channel sum / sum-of-squares + finalize.

    x_ref:                       (NB, CB, TS)  one tile
    gamma/beta/rm/rv:            (CB, 1)
    scale/bias/new_rm/new_rv:    (CB, 1)   written once per channel block
    sum_sc, sumsq_sc:            (CB, 1)   f32 VMEM accumulators
    """
    n = pl.program_id(1)
    s = pl.program_id(2)
    is_first = jnp.logical_and(n == 0, s == 0)
    is_last = jnp.logical_and(n == pl.num_programs(1) - 1,
                              s == pl.num_programs(2) - 1)

    @pl.when(is_first)
    def _init():
        sum_sc[...] = jnp.zeros_like(sum_sc)
        sumsq_sc[...] = jnp.zeros_like(sumsq_sc)

    x = x_ref[...].astype(jnp.float32)                     # (NB, CB, TS)
    xs = jnp.sum(x, axis=0)                                # (CB, TS) VPU adds
    xsq = jnp.sum(x * x, axis=0)
    sum_sc[...] += jnp.sum(xs, axis=1, keepdims=True)      # one XLU reduce
    sumsq_sc[...] += jnp.sum(xsq, axis=1, keepdims=True)

    @pl.when(is_last)
    def _finalize():
        mean = sum_sc[...] * inv_count                     # (CB, 1)
        var = jnp.maximum(sumsq_sc[...] * inv_count - mean * mean, 0.0)
        inv_std = jax.lax.rsqrt(var + eps)
        gamma = gamma_ref[...].astype(jnp.float32)
        beta = beta_ref[...].astype(jnp.float32)
        scale = gamma * inv_std
        scale_ref[...] = scale
        bias_ref[...] = beta - mean * scale
        new_rm_ref[...] = (alpha * mean
                           + (1.0 - alpha) * rm_ref[...].astype(jnp.float32)
                           ).astype(new_rm_ref.dtype)
        new_rv_ref[...] = (alpha * var
                           + (1.0 - alpha) * rv_ref[...].astype(jnp.float32)
                           ).astype(new_rv_ref.dtype)


def _bn_apply_kernel(x_ref, scale_ref, bias_ref, y_ref):
    """Two-pass path, pass 2: y = x * scale + bias (lane-dense streaming)."""
    x = x_ref[...].astype(jnp.float32)                     # (NB, CB, TS)
    scale = scale_ref[...][None, :, :]                     # (1, CB, 1)
    bias = bias_ref[...][None, :, :]
    y_ref[...] = (x * scale + bias).astype(y_ref.dtype)


# ---------------------------------------------------------------------------
# Tiling helpers
# ---------------------------------------------------------------------------
def _pick_channel_block(C, itemsize=4, max_cb=64):
    """Channel (sublane) block.

    Full C when C isn't a multiple of the sublane pack (legal full-dim block);
    otherwise a pack-multiple divisor of C, capped at C//2 whenever possible so
    the channel grid axis has >= 2 blocks (keeps both v7x TensorCores busy)."""
    pack = {4: 8, 2: 16, 1: 32}.get(int(itemsize), 8)
    if C % pack != 0:
        return C
    cap = min(max_cb, C // 2) if (C // 2) >= pack else C
    cb = pack
    while cb * 2 <= cap and C % (cb * 2) == 0:
        cb *= 2
    return cb


def _pick_tiles(N, S, CB, target_elems):
    """(NB, TS) so one (NB, CB, TS) tile holds ~target_elems f32 elements.

    Lane axis first: the largest 128-multiple divisor of S within budget.  If S
    is small or not lane-aligned, keep TS = S and build the tile up over N
    instead (restores ~MiB tiles for late-conv shapes like H*W = 49)."""
    if S >= 128 and S % 128 == 0:
        lane_budget = max(128, target_elems // max(CB, 1))
        ts, t = 128, 128
        while t <= S:
            if S % t == 0 and t <= lane_budget:
                ts = t
            t += 128
    else:
        ts = S
    per_n = CB * ts
    nb, d = 1, 1
    while d <= N:
        if N % d == 0 and d * per_n <= max(target_elems, per_n):
            nb = d
        d += 1
    return nb, ts


# ---------------------------------------------------------------------------
# Public entry points
# ---------------------------------------------------------------------------
def batch_norm_train(x_nchw, gamma, beta, running_mean, running_var,
                     eps=EPS, alpha=ALPHA, force_two_pass=False):
    """Training-mode BatchNorm forward for NCHW input.

    gamma/beta/running_mean/running_var have PyTorch shape (1, C, 1, 1).
    Returns (Y in NCHW, new_running_mean, new_running_var)."""
    N, C, H, W = x_nchw.shape
    S = H * W

    # Free, contiguous views -- no transposes, no extra HBM passes.
    x3d = x_nchw.reshape(N, C, S)
    g = gamma.reshape(C, 1)
    b = beta.reshape(C, 1)
    rm = running_mean.reshape(C, 1)
    rv = running_var.reshape(C, 1)

    itemsize = jnp.dtype(x_nchw.dtype).itemsize
    tile_bytes, fused_limit, vmem_limit = _GEN_CFG[_tpu_generation()]
    target_elems = max(128, tile_bytes // 4)   # f32 compute temporaries dominate

    CB = _pick_channel_block(C, itemsize)
    inv_count = 1.0 / float(N * S)
    cvec_f32 = jax.ShapeDtypeStruct((C, 1), jnp.float32)
    rm_shape = jax.ShapeDtypeStruct((C, 1), running_mean.dtype)
    rv_shape = jax.ShapeDtypeStruct((C, 1), running_var.dtype)

    # ---- Fused single-pass path: one HBM read + one write of x. ------------
    fused_ok = (N * CB * S * 4 <= fused_limit) and not force_two_pass
    if fused_ok:
        x_spec = pl.BlockSpec((N, CB, S), lambda c: (0, c, 0))
        p_spec = pl.BlockSpec((CB, 1), lambda c: (c, 0))
        y3d, new_rm2d, new_rv2d = pl.pallas_call(
            functools.partial(_bn_fused_kernel,
                              inv_count=inv_count, eps=eps, alpha=alpha),
            out_shape=(jax.ShapeDtypeStruct((N, C, S), x_nchw.dtype),
                       rm_shape, rv_shape),
            grid=(C // CB,),
            in_specs=[x_spec, p_spec, p_spec, p_spec, p_spec],
            out_specs=(x_spec, p_spec, p_spec),
            compiler_params=_cparams(("parallel",), vmem_limit),
            cost_estimate=pl.CostEstimate(
                flops=7 * N * C * S, transcendentals=C,
                bytes_accessed=2 * N * C * S * itemsize + 6 * C * 4),
        )(x3d, g, b, rm, rv)
        return (y3d.reshape(N, C, H, W),
                new_rm2d.reshape(1, C, 1, 1),
                new_rv2d.reshape(1, C, 1, 1))

    # ---- Two-pass streaming fallback (BN HBM floor for large shapes). ------
    NB, TS = _pick_tiles(N, S, CB, target_elems)
    grid = (C // CB, N // NB, S // TS)
    x_spec = pl.BlockSpec((NB, CB, TS), lambda c, n, s: (n, c, s))
    p_spec = pl.BlockSpec((CB, 1), lambda c, n, s: (c, 0))

    # Pass 1: per-channel statistics -> scale, bias, new running stats.
    scale, bias, new_rm2d, new_rv2d = pl.pallas_call(
        functools.partial(_bn_stats_kernel,
                          inv_count=inv_count, eps=eps, alpha=alpha),
        out_shape=(cvec_f32, cvec_f32, rm_shape, rv_shape),
        grid=grid,
        in_specs=[x_spec, p_spec, p_spec, p_spec, p_spec],
        out_specs=(p_spec, p_spec, p_spec, p_spec),
        scratch_shapes=[pltpu.VMEM((CB, 1), jnp.float32),
                        pltpu.VMEM((CB, 1), jnp.float32)],
        compiler_params=_cparams(("parallel", "arbitrary", "arbitrary"),
                                 vmem_limit),
        cost_estimate=pl.CostEstimate(
            flops=4 * N * C * S, transcendentals=C,
            bytes_accessed=N * C * S * itemsize + 6 * C * 4),
    )(x3d, g, b, rm, rv)

    # Pass 2: stream y = x * scale + bias.
    y3d = pl.pallas_call(
        _bn_apply_kernel,
        out_shape=jax.ShapeDtypeStruct((N, C, S), x_nchw.dtype),
        grid=grid,
        in_specs=[x_spec, p_spec, p_spec],
        out_specs=x_spec,
        compiler_params=_cparams(("parallel", "parallel", "parallel"),
                                 vmem_limit),
        cost_estimate=pl.CostEstimate(
            flops=2 * N * C * S, transcendentals=0,
            bytes_accessed=2 * N * C * S * itemsize + 2 * C * 4),
    )(x3d, scale, bias)

    return (y3d.reshape(N, C, H, W),
            new_rm2d.reshape(1, C, 1, 1),
            new_rv2d.reshape(1, C, 1, 1))


def batch_norm_eval(x_nchw, gamma, beta, running_mean, running_var, eps=EPS):
    """Eval-mode BatchNorm: normalize with the running stats.  The (C,)-sized
    scale/bias math is negligible; the streaming pass reuses the apply kernel."""
    N, C, H, W = x_nchw.shape
    S = H * W
    x3d = x_nchw.reshape(N, C, S)

    inv_std = jax.lax.rsqrt(running_var.reshape(C, 1).astype(jnp.float32) + eps)
    scale = gamma.reshape(C, 1).astype(jnp.float32) * inv_std
    bias = (beta.reshape(C, 1).astype(jnp.float32)
            - running_mean.reshape(C, 1).astype(jnp.float32) * scale)

    itemsize = jnp.dtype(x_nchw.dtype).itemsize
    tile_bytes, _, vmem_limit = _GEN_CFG[_tpu_generation()]
    target_elems = max(128, tile_bytes // 4)

    CB = _pick_channel_block(C, itemsize)
    NB, TS = _pick_tiles(N, S, CB, target_elems)
    grid = (C // CB, N // NB, S // TS)
    x_spec = pl.BlockSpec((NB, CB, TS), lambda c, n, s: (n, c, s))
    p_spec = pl.BlockSpec((CB, 1), lambda c, n, s: (c, 0))

    y3d = pl.pallas_call(
        _bn_apply_kernel,
        out_shape=jax.ShapeDtypeStruct((N, C, S), x_nchw.dtype),
        grid=grid,
        in_specs=[x_spec, p_spec, p_spec],
        out_specs=x_spec,
        compiler_params=_cparams(("parallel", "parallel", "parallel"),
                                 vmem_limit),
        cost_estimate=pl.CostEstimate(
            flops=2 * N * C * S, transcendentals=0,
            bytes_accessed=2 * N * C * S * itemsize + 2 * C * 4),
    )(x3d, scale, bias)
    return y3d.reshape(N, C, H, W)


# ---------------------------------------------------------------------------
# Self-test
# ---------------------------------------------------------------------------
if __name__ == "__main__":
    def _ref_train(x, gamma, beta, rm, rv, eps=EPS, alpha=ALPHA):
        mean = jnp.mean(x, axis=(0, 2, 3), keepdims=True)
        var = jnp.mean((x - mean) ** 2, axis=(0, 2, 3), keepdims=True)
        y = gamma * (x - mean) / jnp.sqrt(var + eps) + beta
        return (y, alpha * mean + (1 - alpha) * rm, alpha * var + (1 - alpha) * rv)

    # --- primary small-shape check (fused single-pass path) -----------------
    key = jax.random.PRNGKey(0)
    N, C, H, W = 2, 4, 16, 16
    x = jax.random.normal(key, (N, C, H, W), dtype=jnp.float32)
    gamma = jnp.ones((1, C, 1, 1), jnp.float32)
    beta = jnp.zeros((1, C, 1, 1), jnp.float32)
    rm0 = jnp.zeros((1, C, 1, 1), jnp.float32)
    rv0 = jnp.zeros((1, C, 1, 1), jnp.float32)

    y, new_rm, new_rv = batch_norm_train(x, gamma, beta, rm0, rv0)
    jax.block_until_ready((y, new_rm, new_rv))
    y_ref, rm_ref, rv_ref = _ref_train(x, gamma, beta, rm0, rv0)
    assert jnp.allclose(y, y_ref, atol=1e-4, rtol=1e-4), "train Y mismatch"
    assert jnp.allclose(new_rm, rm_ref, atol=1e-5, rtol=1e-5), "running_mean mismatch"
    assert jnp.allclose(new_rv, rv_ref, atol=1e-5, rtol=1e-5), "running_var mismatch"

    # --- eval-mode check with the updated running stats ----------------------
    y_eval = batch_norm_eval(x, gamma, beta, new_rm, new_rv)
    jax.block_until_ready(y_eval)
    y_eval_ref = gamma * (x - new_rm) / jnp.sqrt(new_rv + EPS) + beta
    assert jnp.allclose(y_eval, y_eval_ref, atol=1e-4, rtol=1e-4), "eval Y mismatch"

    # --- exercise the two-pass streaming path (lane-aligned H*W) -------------
    N2, C2, H2, W2 = 2, 16, 16, 16
    x2 = jax.random.normal(jax.random.PRNGKey(1), (N2, C2, H2, W2), jnp.float32)
    g2 = 0.5 + jax.random.uniform(jax.random.PRNGKey(2), (1, C2, 1, 1))
    b2 = 0.1 * jax.random.normal(jax.random.PRNGKey(3), (1, C2, 1, 1))
    rm2 = 0.1 * jax.random.normal(jax.random.PRNGKey(4), (1, C2, 1, 1))
    rv2 = jax.random.uniform(jax.random.PRNGKey(5), (1, C2, 1, 1))
    out2 = batch_norm_train(x2, g2, b2, rm2, rv2, force_two_pass=True)
    jax.block_until_ready(out2)
    for got, want in zip(out2, _ref_train(x2, g2, b2, rm2, rv2)):
        assert jnp.allclose(got, want, atol=1e-4, rtol=1e-4), "two-pass mismatch"

    # --- exercise the N-blocked fallback (small, non-128-multiple H*W) -------
    N3, C3, H3, W3 = 4, 16, 7, 7
    x3 = jax.random.normal(jax.random.PRNGKey(6), (N3, C3, H3, W3), jnp.float32)
    g3 = jnp.ones((1, C3, 1, 1), jnp.float32)
    b3 = jnp.zeros((1, C3, 1, 1), jnp.float32)
    rm3 = jnp.zeros((1, C3, 1, 1), jnp.float32)
    rv3 = jnp.zeros((1, C3, 1, 1), jnp.float32)
    out3 = batch_norm_train(x3, g3, b3, rm3, rv3, force_two_pass=True)
    jax.block_until_ready(out3)
    for got, want in zip(out3, _ref_train(x3, g3, b3, rm3, rv3)):
        assert jnp.allclose(got, want, atol=1e-4, rtol=1e-4), "N-blocked mismatch"

    print("KERNEL_OK")
</pallas_src>

<mosaic_0001>
module attributes {stable_mosaic.version = 11 : i64} {
  func.func @_bn_fused_kernel(%arg0: i32, %arg1: memref<2x4x256xf32, #tpu.memory_space<vmem>>, %arg2: memref<4x1xf32, #tpu.memory_space<vmem>>, %arg3: memref<4x1xf32, #tpu.memory_space<vmem>>, %arg4: memref<4x1xf32, #tpu.memory_space<vmem>>, %arg5: memref<4x1xf32, #tpu.memory_space<vmem>>, %arg6: memref<2x4x256xf32, #tpu.memory_space<vmem>>, %arg7: memref<4x1xf32, #tpu.memory_space<vmem>>, %arg8: memref<4x1xf32, #tpu.memory_space<vmem>>) attributes {dimension_semantics = [#tpu.dimension_semantics<parallel>], iteration_bounds = array<i64: 1>, scalar_prefetch = 0 : i64, scratch_operands = 0 : i64, tpu.core_type = #tpu.core_type<tc>, window_params = [{transform_indices = @transform_0, window_bounds = array<i64: 2, 4, 256>}, {transform_indices = @transform_1, window_bounds = array<i64: 4, 1>}, {transform_indices = @transform_2, window_bounds = array<i64: 4, 1>}, {transform_indices = @transform_3, window_bounds = array<i64: 4, 1>}, {transform_indices = @transform_4, window_bounds = array<i64: 4, 1>}, {transform_indices = @transform_5, window_bounds = array<i64: 2, 4, 256>}, {transform_indices = @transform_6, window_bounds = array<i64: 4, 1>}, {transform_indices = @transform_7, window_bounds = array<i64: 4, 1>}]} {
    %c0 = arith.constant 0 : index
    %c0_0 = arith.constant 0 : index
    %c0_1 = arith.constant 0 : index
    %0 = vector.load %arg1[%c0, %c0_0, %c0_1] : memref<2x4x256xf32, #tpu.memory_space<vmem>>, vector<2x4x256xf32>
    %cst = arith.constant dense<0.000000e+00> : vector<4x256xf32>
    %1 = vector.multi_reduction <add>, %0, %cst [0] : vector<2x4x256xf32> to vector<4x256xf32>
    %2 = arith.mulf %0, %0 : vector<2x4x256xf32>
    %cst_2 = arith.constant dense<0.000000e+00> : vector<4x256xf32>
    %3 = vector.multi_reduction <add>, %2, %cst_2 [0] : vector<2x4x256xf32> to vector<4x256xf32>
    %cst_3 = arith.constant dense<0.000000e+00> : vector<4xf32>
    %4 = vector.multi_reduction <add>, %1, %cst_3 [1] : vector<4x256xf32> to vector<4xf32>
    %5 = vector.shape_cast %4 : vector<4xf32> to vector<4x1xf32>
    %cst_4 = arith.constant 0.001953125 : f32
    %6 = vector.broadcast %cst_4 : f32 to vector<4x1xf32>
    %7 = arith.mulf %5, %6 : vector<4x1xf32>
    %cst_5 = arith.constant dense<0.000000e+00> : vector<4xf32>
    %8 = vector.multi_reduction <add>, %3, %cst_5 [1] : vector<4x256xf32> to vector<4xf32>
    %9 = vector.shape_cast %8 : vector<4xf32> to vector<4x1xf32>
    %cst_6 = arith.constant 0.001953125 : f32
    %10 = vector.broadcast %cst_6 : f32 to vector<4x1xf32>
    %11 = arith.mulf %9, %10 : vector<4x1xf32>
    %12 = arith.mulf %7, %7 : vector<4x1xf32>
    %13 = arith.subf %11, %12 : vector<4x1xf32>
    %cst_7 = arith.constant 0.000000e+00 : f32
    %14 = vector.broadcast %cst_7 : f32 to vector<4x1xf32>
    %15 = arith.maximumf %13, %14 : vector<4x1xf32>
    %cst_8 = arith.constant 9.99999974E-6 : f32
    %16 = vector.broadcast %cst_8 : f32 to vector<4x1xf32>
    %17 = arith.addf %15, %16 : vector<4x1xf32>
    %18 = math.rsqrt %17 : vector<4x1xf32>
    %c0_9 = arith.constant 0 : index
    %c0_10 = arith.constant 0 : index
    %19 = vector.load %arg2[%c0_9, %c0_10] : memref<4x1xf32, #tpu.memory_space<vmem>>, vector<4x1xf32>
    %c0_11 = arith.constant 0 : index
    %c0_12 = arith.constant 0 : index
    %20 = vector.load %arg3[%c0_11, %c0_12] : memref<4x1xf32, #tpu.memory_space<vmem>>, vector<4x1xf32>
    %21 = arith.mulf %19, %18 : vector<4x1xf32>
    %22 = arith.mulf %7, %21 : vector<4x1xf32>
    %23 = arith.subf %20, %22 : vector<4x1xf32>
    %24 = vector.shape_cast %21 : vector<4x1xf32> to vector<1x4x1xf32>
    %25 = vector.broadcast %24 : vector<1x4x1xf32> to vector<2x4x256xf32>
    %26 = arith.mulf %0, %25 : vector<2x4x256xf32>
    %27 = vector.shape_cast %23 : vector<4x1xf32> to vector<1x4x1xf32>
    %28 = vector.broadcast %27 : vector<1x4x1xf32> to vector<2x4x256xf32>
    %29 = arith.addf %26, %28 : vector<2x4x256xf32>
    %c0_13 = arith.constant 0 : index
    %c0_14 = arith.constant 0 : index
    %c0_15 = arith.constant 0 : index
    %30 = vector.load %arg6[%c0_13, %c0_14, %c0_15] : memref<2x4x256xf32, #tpu.memory_space<vmem>>, vector<2x4x256xf32>
    tpu.vector_store %arg6[%c0_13, %c0_14, %c0_15], %29 {strides = array<i32>} : memref<2x4x256xf32, #tpu.memory_space<vmem>>, vector<2x4x256xf32>,
    %cst_16 = arith.constant 0.899999976 : f32
    %31 = vector.broadcast %cst_16 : f32 to vector<4x1xf32>
    %32 = arith.mulf %31, %7 : vector<4x1xf32>
    %c0_17 = arith.constant 0 : index
    %c0_18 = arith.constant 0 : index
    %33 = vector.load %arg4[%c0_17, %c0_18] : memref<4x1xf32, #tpu.memory_space<vmem>>, vector<4x1xf32>
    %cst_19 = arith.constant 1.000000e-01 : f32
    %34 = vector.broadcast %cst_19 : f32 to vector<4x1xf32>
    %35 = arith.mulf %34, %33 : vector<4x1xf32>
    %36 = arith.addf %32, %35 : vector<4x1xf32>
    %c0_20 = arith.constant 0 : index
    %c0_21 = arith.constant 0 : index
    %37 = vector.load %arg7[%c0_20, %c0_21] : memref<4x1xf32, #tpu.memory_space<vmem>>, vector<4x1xf32>
    tpu.vector_store %arg7[%c0_20, %c0_21], %36 {strides = array<i32>} : memref<4x1xf32, #tpu.memory_space<vmem>>, vector<4x1xf32>,
    %cst_22 = arith.constant 0.899999976 : f32
    %38 = vector.broadcast %cst_22 : f32 to vector<4x1xf32>
    %39 = arith.mulf %38, %15 : vector<4x1xf32>
    %c0_23 = arith.constant 0 : index
    %c0_24 = arith.constant 0 : index
    %40 = vector.load %arg5[%c0_23, %c0_24] : memref<4x1xf32, #tpu.memory_space<vmem>>, vector<4x1xf32>
    %cst_25 = arith.constant 1.000000e-01 : f32
    %41 = vector.broadcast %cst_25 : f32 to vector<4x1xf32>
    %42 = arith.mulf %41, %40 : vector<4x1xf32>
    %43 = arith.addf %39, %42 : vector<4x1xf32>
    %c0_26 = arith.constant 0 : index
    %c0_27 = arith.constant 0 : index
    %44 = vector.load %arg8[%c0_26, %c0_27] : memref<4x1xf32, #tpu.memory_space<vmem>>, vector<4x1xf32>
    tpu.vector_store %arg8[%c0_26, %c0_27], %43 {strides = array<i32>} : memref<4x1xf32, #tpu.memory_space<vmem>>, vector<4x1xf32>,
    return
  }
  func.func @transform_0(%arg0: i32) -> (i32, i32, i32) {
    %c0_i32 = arith.constant 0 : i32
    %c0_i32_0 = arith.constant 0 : i32
    %c0_i32_1 = arith.constant 0 : i32
    return %c0_i32, %arg0, %c0_i32_0 : i32, i32, i32
  }
  func.func @transform_1(%arg0: i32) -> (i32, i32) {
    %c0_i32 = arith.constant 0 : i32
    %c0_i32_0 = arith.constant 0 : i32
    return %arg0, %c0_i32 : i32, i32
  }
  func.func @transform_2(%arg0: i32) -> (i32, i32) {
    %c0_i32 = arith.constant 0 : i32
    %c0_i32_0 = arith.constant 0 : i32
    return %arg0, %c0_i32 : i32, i32
  }
  func.func @transform_3(%arg0: i32) -> (i32, i32) {
    %c0_i32 = arith.constant 0 : i32
    %c0_i32_0 = arith.constant 0 : i32
    return %arg0, %c0_i32 : i32, i32
  }
  func.func @transform_4(%arg0: i32) -> (i32, i32) {
    %c0_i32 = arith.constant 0 : i32
    %c0_i32_0 = arith.constant 0 : i32
    return %arg0, %c0_i32 : i32, i32
  }
  func.func @transform_5(%arg0: i32) -> (i32, i32, i32) {
    %c0_i32 = arith.constant 0 : i32
    %c0_i32_0 = arith.constant 0 : i32
    %c0_i32_1 = arith.constant 0 : i32
    return %c0_i32, %arg0, %c0_i32_0 : i32, i32, i32
  }
  func.func @transform_6(%arg0: i32) -> (i32, i32) {
    %c0_i32 = arith.constant 0 : i32
    %c0_i32_0 = arith.constant 0 : i32
    return %arg0, %c0_i32 : i32, i32
  }
  func.func @transform_7(%arg0: i32) -> (i32, i32) {
    %c0_i32 = arith.constant 0 : i32
    %c0_i32_0 = arith.constant 0 : i32
    return %arg0, %c0_i32 : i32, i32
  }
}

</mosaic_0001>

<llo_original>
// kernel: tpu_custom_call.1
$region0: #{tpu_custom_call.1}
  #allocation0 [shape = 'u32[]', space=smem, size = 0x4, offset = 0x4, fixed_abs, tag = 'smem constant byte address 0x4 - core index']
  #allocation1 [shape = 'u32[144,128]{1,0:T(1,128)}', space=vmem, size = 0x12000, scoped, tag = 'internal scratch']
  %s0 = inlined_call_operand.vmem [shape: f32[2,4,256], index: 0, kind: input, shape index: {}]
  %s1 = inlined_call_operand.vmem [shape: f32[4,1], index: 1, kind: input, shape index: {}]
  %s2 = inlined_call_operand.vmem [shape: f32[4,1], index: 2, kind: input, shape index: {}]
  %s3 = inlined_call_operand.vmem [shape: f32[4,1], index: 3, kind: input, shape index: {}]
  %s4 = inlined_call_operand.vmem [shape: f32[4,1], index: 4, kind: input, shape index: {}]
  %s5 = inlined_call_operand.hbm [shape: f32[2,4,256], index: 5, kind: output, shape index: {0}]
  %s6 = inlined_call_operand.vmem [shape: f32[4,1], index: 6, kind: output, shape index: {1}]
  %s7 = inlined_call_operand.vmem [shape: f32[4,1], index: 7, kind: output, shape index: {2}]
  %8 = xla_tuple %s5, %s6, %s7
  %s9 = sld [smem:[#allocation0]]
  $region46: #{tpu_custom_call.1} parent=0
    _
  %s11 = ssub.s32 1, %s9
  %s12 = scalar_select 0, %s11, %s9
  $region1: #{tpu_custom_call.1} parent=0
    #allocation2 [shape = 'u8[8192]{0}', space=vmem, size = 0x2000, scoped, tag = 'output window, operand 0, single buffered']
    #allocation3 [shape = 's32[1]{0}', space=sflag, size = 0x4, scoped, tag = 'scoped memory for tpu_custom_call.1']
    %13 = vsyncpa [#allocation3], 0
    // Predicated region
    $region2: #{tpu_custom_call.1} parent=1 // pred_check
      _
    $region3: #{tpu_custom_call.1} parent=1 // pred_check_branch
      %15 = sbr.rel (0) target = $region5
    $region4: #{tpu_custom_call.1} parent=1 // pred_region
      _
    $region5: #{tpu_custom_call.1} parent=1 // pred_fallthru
      _
    // Predicated region
    $region6: #{tpu_custom_call.1} parent=1 // pred_check
      _
    $region7: #{tpu_custom_call.1} parent=1 // pred_check_branch
      %17 = sbr.rel (0) target = $region9
    $region8: #{tpu_custom_call.1} parent=1 // pred_region
      _
    $region9: #{tpu_custom_call.1} parent=1 // pred_fallthru
      _
    // Predicated region
    $region10: #{tpu_custom_call.1} parent=1 // pred_check
      _
    $region11: #{tpu_custom_call.1} parent=1 // pred_check_branch
      %19 = sbr.rel (0) target = $region13
    $region12: #{tpu_custom_call.1} parent=1 // pred_region
      _
    $region13: #{tpu_custom_call.1} parent=1 // pred_fallthru
      _
    // Predicated region
    $region14: #{tpu_custom_call.1} parent=1 // pred_check
      _
    $region15: #{tpu_custom_call.1} parent=1 // pred_check_branch
      %21 = sbr.rel (0) target = $region17
    $region16: #{tpu_custom_call.1} parent=1 // pred_region
      _
    $region17: #{tpu_custom_call.1} parent=1 // pred_fallthru
      _
    // Predicated region
    $region18: #{tpu_custom_call.1} parent=1 // pred_check
      _
    $region19: #{tpu_custom_call.1} parent=1 // pred_check_branch
      %23 = sbr.rel (0) target = $region21
    $region20: #{tpu_custom_call.1} parent=1 // pred_region
      _
    $region21: #{tpu_custom_call.1} parent=1 // pred_fallthru
      _
    %v24 = vld [vmem:[%s0] sm:$0xff]
    %v25 = vld [vmem:[%s0 + $0x8] sm:$0xff]
    %v28 = vcombine.high %v24, %v24
    %v29 = vcombine.high %v25, %v25
    %vm32 = vcmask 1043456
    %v33 = vsel %vm32, %v24, 0.0
    %v34 = vsel %vm32, %v25, 0.0
    %v35 = vadd.f32 %v33, %v34
    %v36 = vsel %vm32, %v28, 0.0
    %v37 = vsel %vm32, %v29, 0.0
    %v38 = vadd.f32 %v36, %v37
    %v39 = vmul.f32 %v24, %v24
    %v40 = vmul.f32 %v25, %v25
    %v43 = vcombine.high %v39, %v39
    %v44 = vcombine.high %v40, %v40
    %v47 = vsel %vm32, %v39, 0.0
    %v48 = vsel %vm32, %v40, 0.0
    %v49 = vadd.f32 %v47, %v48
    %v50 = vsel %vm32, %v43, 0.0
    %v51 = vsel %vm32, %v44, 0.0
    %v52 = vadd.f32 %v50, %v51
    %v53 = vsel %vm32, %v35, 0.0
    %v54 = vsel %vm32, %v38, 0.0
    %v55 = vadd.f32 %v53, %v54
    %56 = vadd.xlane.f32.xlu0 %v55
    %v57 = vpop.xlane.xlu0 %56
    %v58 = vmul.f32 %v57, 0.001953125
    %v59 = vsel %vm32, %v49, 0.0
    %v60 = vsel %vm32, %v52, 0.0
    %v61 = vadd.f32 %v59, %v60
    %62 = vadd.xlane.f32.xlu0 %v61
    %v63 = vpop.xlane.xlu0 %62
    %v64 = vmul.f32 %v63, 0.001953125
    %v65 = vmul.f32 %v58, %v58
    %v66 = vsub.f32 %v64, %v65
    %v67 = vmax.f32 %v66, 0.0
    %v68 = vadd.f32 %v67, 1e-05
    %v69 = vrsqrt.pop %v68
    %v70 = vld [vmem:[%s1] sm:$0xf]
    %v71 = vld [vmem:[%s2] sm:$0xf]
    %v72 = vmul.f32 %v70, %v69
    %v73 = vmul.f32 %v58, %v72
    %v74 = vsub.f32 %v71, %v73
    %76 = vset.pattern.permute.xlu0 0
    %77 = vperm.xlu0 %76, %v72
    %v78 = vpop.permute.xlu0 %77
    %v80 = vunpack.c.l.s4 839922192
    %v81 = vunpack.c.0.s8 %v80
    %v82 = vlaneseq
    %v83 = vshrl.u32 %v82, 7
    %v84 = vsub.s32 %v81, %v83
    %v85 = vrot.slane %v78, %v84
    %v87 = vmul.f32 %v24, %v85
    %v88 = vmul.f32 %v25, %v85
    %90 = vset.pattern.permute.xlu0 0
    %91 = vperm.xlu0 %90, %v74
    %v92 = vpop.permute.xlu0 %91
    %v94 = vunpack.c.l.s4 839922192
    %v95 = vunpack.c.0.s8 %v94
    %v96 = vlaneseq
    %v97 = vshrl.u32 %v96, 7
    %v98 = vsub.s32 %v95, %v97
    %v99 = vrot.slane %v92, %v98
    %v101 = vadd.f32 %v87, %v99
    %v102 = vadd.f32 %v88, %v99
    %103 = vst [vmem:[#allocation2] sm:$0xff] %v101
    %104 = vst [vmem:[#allocation2 + $0x8] sm:$0xff] %v102
    %v105 = vmul.f32 %v58, 0.9
    %v106 = vld [vmem:[%s3] sm:$0xf]
    %v107 = vmul.f32 %v106, 0.1
    %v108 = vadd.f32 %v105, %v107
    %vm109 = vcmask 3072
    %110 = vst.msk [vmem:[%s6] sm:$0xf] %vm109, %v108
    %v111 = vmul.f32 %v67, 0.9
    %v112 = vld [vmem:[%s4] sm:$0xf]
    %v113 = vmul.f32 %v112, 0.1
    %v114 = vadd.f32 %v111, %v113
    %115 = vst.msk [vmem:[%s7] sm:$0xf] %vm109, %v114
    // Predicated region
    $region22: #{tpu_custom_call.1} parent=1 // pred_check
      _
    $region23: #{tpu_custom_call.1} parent=1 // pred_check_branch
      %117 = sbr.rel (0) target = $region25
    $region24: #{tpu_custom_call.1} parent=1 // pred_region
      %s119 = ssub.s32 256, 256
      %120 = vsyncadd [#allocation3], %s119
      %s121 = sshll.u32 [#allocation2], 4
      %s122 = int_to_ptr.vmem [resolvable:$true] %s121
      %127 = dma.vmem_to_hbm [thread:$0]  %s122, 256, %s5, [#allocation3], 128, 128, 8
    $region25: #{tpu_custom_call.1} parent=1 // pred_fallthru
      _
    // Predicated region
    $region26: #{tpu_custom_call.1} parent=1 // pred_check
      _
    $region27: #{tpu_custom_call.1} parent=1 // pred_check_branch
      %129 = sbr.rel (0) target = $region29
    $region28: #{tpu_custom_call.1} parent=1 // pred_region
      _
    $region29: #{tpu_custom_call.1} parent=1 // pred_fallthru
      _
    // Predicated region
    $region30: #{tpu_custom_call.1} parent=1 // pred_check
      _
    $region31: #{tpu_custom_call.1} parent=1 // pred_check_branch
      %131 = sbr.rel (0) target = $region33
    $region32: #{tpu_custom_call.1} parent=1 // pred_region
      _
    $region33: #{tpu_custom_call.1} parent=1 // pred_fallthru
      _
    // Predicated region
    $region34: #{tpu_custom_call.1} parent=1 // pred_check
      _
    $region35: #{tpu_custom_call.1} parent=1 // pred_check_branch
      %133 = sbr.rel (0) target = $region37
    $region36: #{tpu_custom_call.1} parent=1 // pred_region
      %134 = dma.done [#allocation3], 256
    $region37: #{tpu_custom_call.1} parent=1 // pred_fallthru
      _
    // Predicated region
    $region38: #{tpu_custom_call.1} parent=1 // pred_check
      _
    $region39: #{tpu_custom_call.1} parent=1 // pred_check_branch
      %136 = sbr.rel (0) target = $region41
    $region40: #{tpu_custom_call.1} parent=1 // pred_region
      _
    $region41: #{tpu_custom_call.1} parent=1 // pred_fallthru
      _
    // Predicated region
    $region42: #{tpu_custom_call.1} parent=1 // pred_check
      _
    $region43: #{tpu_custom_call.1} parent=1 // pred_check_branch
      %138 = sbr.rel (0) target = $region45
    $region44: #{tpu_custom_call.1} parent=1 // pred_region
      _
    $region45: #{tpu_custom_call.1} parent=1 // pred_fallthru
      _
    %139 = vsyncpa [#allocation3], 1

</llo_original>
